<compile_context>
chip_gen: v5e
topology: v5e:2x2
jax: 0.10.0
libtpu: 0.0.40
codegen_flags: <defaults>
</compile_context>

<pallas_src>
import jax
import jax.numpy as jnp
from jax.experimental import pallas as pl
from jax.experimental.pallas import tpu as pltpu


# ----------------------------- Pallas kernel --------------------------------


def temporal_attention_kernel(x_ref, w_ref, be_ref, ve_ref, o_ref):
    bt, T, P = x_ref.shape            # P = F * N
    two_n = w_ref.shape[1]
    N = two_n // 2

    # ---- fused U1/U2/U3 projection: one MXU matmul, K = F*N ----------------
    # Rows of x2d are (b, t) pairs; T % 8 == 0 so this reshape is layout-free.
    x2d = x_ref[...].reshape(bt * T, P)                        # [bt*T, F*N]
    proj = jnp.dot(x2d, w_ref[...],
                   preferred_element_type=jnp.float32)         # [bt*T, 2N]
    lhs = proj[:, :N].reshape(bt, T, N)                        # [bt, T, N]
    rhs_t = proj[:, N:].reshape(bt, T, N)                      # [bt, T, N]  (= rhs^T)

    # ---- product[b,t,s] = sum_n lhs[b,t,n] * rhs[b,n,s]  (batched MXU) -----
    product = jnp.einsum('btn,bsn->bts', lhs, rhs_t,
                         preferred_element_type=jnp.float32)   # [bt, T, T]

    # ---- sigmoid(product + be)  (exp on the EUP slot) -----------------------
    z = product + be_ref[...][None, :, :]
    sig = 1.0 / (1.0 + jnp.exp(-z))                            # [bt, T, T]

    # ---- fold batch into lanes: [bt, T, T] -> [T, bt*T], col = b*T + s ------
    sig_c = jnp.concatenate([sig[b] for b in range(bt)], axis=-1)

    # ---- E = Ve @ sig : one lane-dense [T,T] @ [T, bt*T] MXU matmul ---------
    e = jnp.dot(ve_ref[...], sig_c,
                preferred_element_type=jnp.float32)            # [T, bt*T]

    # ---- softmax over the first T axis (== original dim=1) -----------------
    m = jnp.max(e, axis=0, keepdims=True)
    p = jnp.exp(e - m)
    denom = jnp.sum(p, axis=0, keepdims=True)
    o_ref[...] = (p / denom).astype(o_ref.dtype)               # lane-dense store


# ------------------------------ host wrapper ---------------------------------


def _pick_b_tile(B, T):
    # Smallest divisor of B whose folded column width (b_tile*T) is a multiple
    # of 128 (lane-dense store + legal BlockSpec). Fall back to the full batch
    # (block == full array dim is always legal).
    for d in range(1, B + 1):
        if B % d == 0 and (d * T) % 128 == 0:
            return d
    return B


def temporal_attention_forward(x, u1, u2, u3, be, ve, *, b_tile=None):
    """x: [B, N, F, T] float32  ->  [B, T, T] float32."""
    B, N, F, T = x.shape
    P = F * N

    if b_tile is None:
        b_tile = _pick_b_tile(B, T)
    assert B % b_tile == 0, "batch must be divisible by b_tile"
    assert (b_tile * T) % 128 == 0 or b_tile == B, "output block not legal"
    assert T % 8 == 0, "T must be a sublane multiple for the free reshapes"

    f32 = jnp.float32

    # Layout plumbing: put (F, N) on the two minor axes so the whole projection
    # is a single [bt*T, F*N] @ [F*N, 2N] matmul inside the kernel.
    # TODO(synk): at production shapes fuse this one transpose pass into the
    # producer (or relayout in-kernel) to avoid the extra HBM round trip on x.
    x2 = jnp.transpose(x, (0, 3, 2, 1)).astype(f32).reshape(B, T, P)

    u1f, u2f, u3f = u1.astype(f32), u2.astype(f32), u3.astype(f32)
    # Host-precomputed fused projection weights:
    #   lhs  = x2 @ w_lhs   with  w_lhs[f*N+n, n'] = U1[n] * U2[f, n']
    #   rhsT = x2 @ w_rhs   with  w_rhs[f*N+n, n'] = U3[f] * delta[n, n']
    w_lhs = (u2f[:, None, :] * u1f[None, :, None]).reshape(P, N)
    w_rhs = (u3f[:, None, None] * jnp.eye(N, dtype=f32)[None, :, :]).reshape(P, N)
    w = jnp.concatenate([w_lhs, w_rhs], axis=1)                # [P, 2N]

    be2 = be.reshape(T, T).astype(f32)
    vef = ve.astype(f32)

    grid = (B // b_tile,)
    cols = b_tile * T

    # VMEM budget: double-buffered x/out blocks + resident weights + headroom.
    x_bytes = b_tile * T * P * 4
    o_bytes = T * cols * 4
    w_bytes = (P * 2 * N + 2 * T * T) * 4
    vmem_limit = int(min(100 * 2**20,
                         max(16 * 2**20, 8 * (x_bytes + o_bytes) + 2 * w_bytes)))

    out2d = pl.pallas_call(
        temporal_attention_kernel,
        out_shape=jax.ShapeDtypeStruct((T, B * T), f32),
        grid_spec=pltpu.PrefetchScalarGridSpec(
            num_scalar_prefetch=0,
            grid=grid,
            in_specs=[
                pl.BlockSpec((b_tile, T, P), lambda i: (i, 0, 0)),   # x rows
                pl.BlockSpec((P, 2 * N), lambda i: (0, 0)),          # fused W
                pl.BlockSpec((T, T), lambda i: (0, 0)),              # be
                pl.BlockSpec((T, T), lambda i: (0, 0)),              # Ve
            ],
            out_specs=pl.BlockSpec((T, cols), lambda i: (0, i)),
        ),
        compiler_params=pltpu.CompilerParams(
            dimension_semantics=("parallel",),
            vmem_limit_bytes=vmem_limit),
    )(x2, w, be2, vef)

    # Un-fold the lane-packed output: [T, B*T] (col = b*T + s) -> [B, T, T].
    return jnp.transpose(out2d.reshape(T, B, T), (1, 0, 2))


# ------------------------------ pure-JAX reference ---------------------------


def temporal_attention_reference(x, u1, u2, u3, be, ve):
    hp = jax.lax.Precision.HIGHEST
    lhs = jnp.matmul(
        jnp.matmul(jnp.transpose(x, (0, 3, 2, 1)), u1, precision=hp),
        u2, precision=hp)                                   # [B, T, N]
    rhs = jnp.matmul(u3, x, precision=hp)                   # [B, N, T]
    product = jnp.matmul(lhs, rhs, precision=hp)            # [B, T, T]
    e = jnp.matmul(ve, jax.nn.sigmoid(product + be), precision=hp)
    return jax.nn.softmax(e, axis=1)


# --------------------------------- main ---------------------------------------


if __name__ == "__main__":
    B, N, F_in, T = 32, 16, 4, 8    # batch, vertices, in_channels, timesteps

    key = jax.random.PRNGKey(0)
    kx, k1, k2, k3, kb, kv = jax.random.split(key, 6)

    x = jax.random.normal(kx, (B, N, F_in, T), dtype=jnp.float32)
    u1 = 0.3 * jax.random.normal(k1, (N,), dtype=jnp.float32)
    u2 = 0.3 * jax.random.normal(k2, (F_in, N), dtype=jnp.float32)
    u3 = 0.3 * jax.random.normal(k3, (F_in,), dtype=jnp.float32)
    be = jax.random.normal(kb, (1, T, T), dtype=jnp.float32)
    ve = 0.3 * jax.random.normal(kv, (T, T), dtype=jnp.float32)

    out = jax.block_until_ready(
        temporal_attention_forward(x, u1, u2, u3, be, ve))   # b_tile auto -> 16
    ref = jax.block_until_ready(
        temporal_attention_reference(x, u1, u2, u3, be, ve))

    assert out.shape == (B, T, T)
    max_err = float(jnp.max(jnp.abs(out - ref)))
    assert jnp.allclose(out, ref, atol=1e-4, rtol=1e-4), (
        f"max abs err = {max_err}")

    print("KERNEL_OK")
</pallas_src>

<mosaic_0001>
module attributes {stable_mosaic.version = 11 : i64} {
  func.func @temporal_attention_kernel(%arg0: i32, %arg1: memref<16x8x64xf32, #tpu.memory_space<vmem>>, %arg2: memref<64x32xf32, #tpu.memory_space<vmem>>, %arg3: memref<8x8xf32, #tpu.memory_space<vmem>>, %arg4: memref<8x8xf32, #tpu.memory_space<vmem>>, %arg5: memref<8x128xf32, #tpu.memory_space<vmem>>) attributes {dimension_semantics = [#tpu.dimension_semantics<parallel>], iteration_bounds = array<i64: 2>, scalar_prefetch = 0 : i64, scratch_operands = 0 : i64, tpu.core_type = #tpu.core_type<tc>, window_params = [{transform_indices = @transform_0, window_bounds = array<i64: 16, 8, 64>}, {pipeline_mode = #tpu.pipeline_mode<synchronous>, transform_indices = @transform_1, window_bounds = array<i64: 64, 32>}, {pipeline_mode = #tpu.pipeline_mode<synchronous>, transform_indices = @transform_2, window_bounds = array<i64: 8, 8>}, {pipeline_mode = #tpu.pipeline_mode<synchronous>, transform_indices = @transform_3, window_bounds = array<i64: 8, 8>}, {transform_indices = @transform_4, window_bounds = array<i64: 8, 128>}]} {
    %c0 = arith.constant 0 : index
    %c0_0 = arith.constant 0 : index
    %c0_1 = arith.constant 0 : index
    %0 = vector.load %arg1[%c0, %c0_0, %c0_1] : memref<16x8x64xf32, #tpu.memory_space<vmem>>, vector<16x8x64xf32>
    %1 = vector.shape_cast %0 : vector<16x8x64xf32> to vector<128x64xf32>
    %c0_2 = arith.constant 0 : index
    %c0_3 = arith.constant 0 : index
    %2 = vector.load %arg2[%c0_2, %c0_3] : memref<64x32xf32, #tpu.memory_space<vmem>>, vector<64x32xf32>
    %cst = arith.constant dense<0.000000e+00> : vector<128x32xf32>
    %3 = tpu.matmul %1, %2, %cst {dimension_numbers = #tpu.dot_dimension_numbers<[1], [0], [0], [1], [0, 0, 1, 1], [], []>} : vector<128x64xf32>, vector<64x32xf32>, vector<128x32xf32> -> vector<128x32xf32>
    %4 = vector.extract_strided_slice %3 {offsets = [0, 0], sizes = [128, 16], strides = [1, 1]} : vector<128x32xf32> to vector<128x16xf32>
    %5 = vector.shape_cast %4 : vector<128x16xf32> to vector<16x8x16xf32>
    %6 = vector.extract_strided_slice %3 {offsets = [0, 16], sizes = [128, 16], strides = [1, 1]} : vector<128x32xf32> to vector<128x16xf32>
    %7 = vector.shape_cast %6 : vector<128x16xf32> to vector<16x8x16xf32>
    "tpu.trace_start"() <{level = 10 : i32, message = "btn,bsn->bts"}> : () -> ()
    %cst_4 = arith.constant dense<0.000000e+00> : vector<16x8x8xf32>
    %8 = tpu.matmul %5, %7, %cst_4 {dimension_numbers = #tpu.dot_dimension_numbers<[2], [2], [1], [1], [0, 0, 0, 1, 1, 1], [0], [0]>} : vector<16x8x16xf32>, vector<16x8x16xf32>, vector<16x8x8xf32> -> vector<16x8x8xf32>
    "tpu.trace_stop"() : () -> ()
    %c0_5 = arith.constant 0 : index
    %c0_6 = arith.constant 0 : index
    %9 = vector.load %arg3[%c0_5, %c0_6] : memref<8x8xf32, #tpu.memory_space<vmem>>, vector<8x8xf32>
    %10 = vector.shape_cast %9 : vector<8x8xf32> to vector<1x8x8xf32>
    %11 = vector.broadcast %10 : vector<1x8x8xf32> to vector<16x8x8xf32>
    %12 = arith.addf %8, %11 : vector<16x8x8xf32>
    %cst_7 = arith.constant 0.000000e+00 : f32
    %13 = vector.broadcast %cst_7 : f32 to vector<16x8x8xf32>
    %14 = arith.subf %13, %12 : vector<16x8x8xf32>
    %15 = math.exp %14 : vector<16x8x8xf32>
    %cst_8 = arith.constant 1.000000e+00 : f32
    %16 = vector.broadcast %cst_8 : f32 to vector<16x8x8xf32>
    %17 = arith.addf %16, %15 : vector<16x8x8xf32>
    %cst_9 = arith.constant 1.000000e+00 : f32
    %18 = vector.broadcast %cst_9 : f32 to vector<16x8x8xf32>
    %19 = arith.divf %18, %17 : vector<16x8x8xf32>
    %20 = vector.extract_strided_slice %19 {offsets = [0, 0, 0], sizes = [1, 8, 8], strides = [1, 1, 1]} : vector<16x8x8xf32> to vector<1x8x8xf32>
    %21 = vector.shape_cast %20 : vector<1x8x8xf32> to vector<8x8xf32>
    %22 = vector.extract_strided_slice %19 {offsets = [1, 0, 0], sizes = [1, 8, 8], strides = [1, 1, 1]} : vector<16x8x8xf32> to vector<1x8x8xf32>
    %23 = vector.shape_cast %22 : vector<1x8x8xf32> to vector<8x8xf32>
    %24 = vector.extract_strided_slice %19 {offsets = [2, 0, 0], sizes = [1, 8, 8], strides = [1, 1, 1]} : vector<16x8x8xf32> to vector<1x8x8xf32>
    %25 = vector.shape_cast %24 : vector<1x8x8xf32> to vector<8x8xf32>
    %26 = vector.extract_strided_slice %19 {offsets = [3, 0, 0], sizes = [1, 8, 8], strides = [1, 1, 1]} : vector<16x8x8xf32> to vector<1x8x8xf32>
    %27 = vector.shape_cast %26 : vector<1x8x8xf32> to vector<8x8xf32>
    %28 = vector.extract_strided_slice %19 {offsets = [4, 0, 0], sizes = [1, 8, 8], strides = [1, 1, 1]} : vector<16x8x8xf32> to vector<1x8x8xf32>
    %29 = vector.shape_cast %28 : vector<1x8x8xf32> to vector<8x8xf32>
    %30 = vector.extract_strided_slice %19 {offsets = [5, 0, 0], sizes = [1, 8, 8], strides = [1, 1, 1]} : vector<16x8x8xf32> to vector<1x8x8xf32>
    %31 = vector.shape_cast %30 : vector<1x8x8xf32> to vector<8x8xf32>
    %32 = vector.extract_strided_slice %19 {offsets = [6, 0, 0], sizes = [1, 8, 8], strides = [1, 1, 1]} : vector<16x8x8xf32> to vector<1x8x8xf32>
    %33 = vector.shape_cast %32 : vector<1x8x8xf32> to vector<8x8xf32>
    %34 = vector.extract_strided_slice %19 {offsets = [7, 0, 0], sizes = [1, 8, 8], strides = [1, 1, 1]} : vector<16x8x8xf32> to vector<1x8x8xf32>
    %35 = vector.shape_cast %34 : vector<1x8x8xf32> to vector<8x8xf32>
    %36 = vector.extract_strided_slice %19 {offsets = [8, 0, 0], sizes = [1, 8, 8], strides = [1, 1, 1]} : vector<16x8x8xf32> to vector<1x8x8xf32>
    %37 = vector.shape_cast %36 : vector<1x8x8xf32> to vector<8x8xf32>
    %38 = vector.extract_strided_slice %19 {offsets = [9, 0, 0], sizes = [1, 8, 8], strides = [1, 1, 1]} : vector<16x8x8xf32> to vector<1x8x8xf32>
    %39 = vector.shape_cast %38 : vector<1x8x8xf32> to vector<8x8xf32>
    %40 = vector.extract_strided_slice %19 {offsets = [10, 0, 0], sizes = [1, 8, 8], strides = [1, 1, 1]} : vector<16x8x8xf32> to vector<1x8x8xf32>
    %41 = vector.shape_cast %40 : vector<1x8x8xf32> to vector<8x8xf32>
    %42 = vector.extract_strided_slice %19 {offsets = [11, 0, 0], sizes = [1, 8, 8], strides = [1, 1, 1]} : vector<16x8x8xf32> to vector<1x8x8xf32>
    %43 = vector.shape_cast %42 : vector<1x8x8xf32> to vector<8x8xf32>
    %44 = vector.extract_strided_slice %19 {offsets = [12, 0, 0], sizes = [1, 8, 8], strides = [1, 1, 1]} : vector<16x8x8xf32> to vector<1x8x8xf32>
    %45 = vector.shape_cast %44 : vector<1x8x8xf32> to vector<8x8xf32>
    %46 = vector.extract_strided_slice %19 {offsets = [13, 0, 0], sizes = [1, 8, 8], strides = [1, 1, 1]} : vector<16x8x8xf32> to vector<1x8x8xf32>
    %47 = vector.shape_cast %46 : vector<1x8x8xf32> to vector<8x8xf32>
    %48 = vector.extract_strided_slice %19 {offsets = [14, 0, 0], sizes = [1, 8, 8], strides = [1, 1, 1]} : vector<16x8x8xf32> to vector<1x8x8xf32>
    %49 = vector.shape_cast %48 : vector<1x8x8xf32> to vector<8x8xf32>
    %50 = vector.extract_strided_slice %19 {offsets = [15, 0, 0], sizes = [1, 8, 8], strides = [1, 1, 1]} : vector<16x8x8xf32> to vector<1x8x8xf32>
    %51 = vector.shape_cast %50 : vector<1x8x8xf32> to vector<8x8xf32>
    %52 = tpu.concatenate %21, %23, %25, %27, %29, %31, %33, %35, %37, %39, %41, %43, %45, %47, %49, %51 in 1 : vector<8x8xf32>, vector<8x8xf32>, vector<8x8xf32>, vector<8x8xf32>, vector<8x8xf32>, vector<8x8xf32>, vector<8x8xf32>, vector<8x8xf32>, vector<8x8xf32>, vector<8x8xf32>, vector<8x8xf32>, vector<8x8xf32>, vector<8x8xf32>, vector<8x8xf32>, vector<8x8xf32>, vector<8x8xf32> -> vector<8x128xf32>
    %c0_10 = arith.constant 0 : index
    %c0_11 = arith.constant 0 : index
    %53 = vector.load %arg4[%c0_10, %c0_11] : memref<8x8xf32, #tpu.memory_space<vmem>>, vector<8x8xf32>
    %cst_12 = arith.constant dense<0.000000e+00> : vector<8x128xf32>
    %54 = tpu.matmul %53, %52, %cst_12 {dimension_numbers = #tpu.dot_dimension_numbers<[1], [0], [0], [1], [0, 0, 1, 1], [], []>} : vector<8x8xf32>, vector<8x128xf32>, vector<8x128xf32> -> vector<8x128xf32>
    %cst_13 = arith.constant dense<0xFF800000> : vector<128xf32>
    %55 = vector.multi_reduction <maximumf>, %54, %cst_13 [0] : vector<8x128xf32> to vector<128xf32>
    %56 = vector.shape_cast %55 : vector<128xf32> to vector<1x128xf32>
    %57 = vector.broadcast %56 : vector<1x128xf32> to vector<8x128xf32>
    %58 = arith.subf %54, %57 : vector<8x128xf32>
    %59 = math.exp %58 : vector<8x128xf32>
    %cst_14 = arith.constant dense<0.000000e+00> : vector<128xf32>
    %60 = vector.multi_reduction <add>, %59, %cst_14 [0] : vector<8x128xf32> to vector<128xf32>
    %61 = vector.shape_cast %60 : vector<128xf32> to vector<1x128xf32>
    %62 = vector.broadcast %61 : vector<1x128xf32> to vector<8x128xf32>
    %63 = arith.divf %59, %62 : vector<8x128xf32>
    %c0_15 = arith.constant 0 : index
    %c0_16 = arith.constant 0 : index
    %64 = vector.load %arg5[%c0_15, %c0_16] : memref<8x128xf32, #tpu.memory_space<vmem>>, vector<8x128xf32>
    tpu.vector_store %arg5[%c0_15, %c0_16], %63 {strides = array<i32>} : memref<8x128xf32, #tpu.memory_space<vmem>>, vector<8x128xf32>,
    return
  }
  func.func @transform_0(%arg0: i32) -> (i32, i32, i32) {
    %c0_i32 = arith.constant 0 : i32
    %c0_i32_0 = arith.constant 0 : i32
    %c0_i32_1 = arith.constant 0 : i32
    return %arg0, %c0_i32, %c0_i32_0 : i32, i32, i32
  }
  func.func @transform_1(%arg0: i32) -> (i32, i32) {
    %c0_i32 = arith.constant 0 : i32
    %c0_i32_0 = arith.constant 0 : i32
    %c0_i32_1 = arith.constant 0 : i32
    return %c0_i32, %c0_i32_0 : i32, i32
  }
  func.func @transform_2(%arg0: i32) -> (i32, i32) {
    %c0_i32 = arith.constant 0 : i32
    %c0_i32_0 = arith.constant 0 : i32
    %c0_i32_1 = arith.constant 0 : i32
    return %c0_i32, %c0_i32_0 : i32, i32
  }
  func.func @transform_3(%arg0: i32) -> (i32, i32) {
    %c0_i32 = arith.constant 0 : i32
    %c0_i32_0 = arith.constant 0 : i32
    %c0_i32_1 = arith.constant 0 : i32
    return %c0_i32, %c0_i32_0 : i32, i32
  }
  func.func @transform_4(%arg0: i32) -> (i32, i32) {
    %c0_i32 = arith.constant 0 : i32
    %c0_i32_0 = arith.constant 0 : i32
    return %c0_i32, %arg0 : i32, i32
  }
}

</mosaic_0001>

<llo_original>
// kernel: tpu_custom_call.1
$region0: #{tpu_custom_call.1}
  #allocation0 [shape = 'u32[]', space=smem, size = 0x4, offset = 0x4, fixed_abs, tag = 'smem constant byte address 0x4 - core index']
  #allocation1 [shape = 'u32[72,128]{1,0:T(1,128)}', space=vmem, size = 0x9000, scoped, tag = 'internal scratch']
  %s0 = inlined_call_operand.hbm [shape: f32[32,8,64], index: 0, kind: input, shape index: {}]
  %s1 = inlined_call_operand.vmem [shape: f32[64,32], index: 1, kind: input, shape index: {}]
  %s2 = inlined_call_operand.vmem [shape: f32[8,8], index: 2, kind: input, shape index: {}]
  %s3 = inlined_call_operand.vmem [shape: f32[8,8], index: 3, kind: input, shape index: {}]
  %s4 = inlined_call_operand.hbm [shape: f32[8,256], index: 4, kind: output, shape index: {}]
  %s5 = sld [smem:[#allocation0]]
  $region53: #{tpu_custom_call.1} parent=0
    _
  %s7 = ssub.s32 1, %s5
  %s8 = scalar_select 0, %s7, %s5
  $region1: #{tpu_custom_call.1} parent=0
    #allocation2 [shape = 'u8[131072]{0}', space=vmem, size = 0x20000, scoped, tag = 'input window, operand 0']
    #allocation3 [shape = 's32[2]{0}', space=sflag, size = 0x8, scoped, tag = 'scoped memory for tpu_custom_call.1']
    #allocation4 [shape = 's32[2]{0}', space=sflag, size = 0x8, scoped, tag = 'scoped memory for tpu_custom_call.1']
    #allocation5 [shape = 'u8[8192]{0}', space=vmem, size = 0x2000, scoped, tag = 'output window, operand 0']
    %9 = vsyncpa [#allocation3], 0
    %s10 = scalar_lea.sflag [#allocation3], 1
    %11 = vsyncpa %s10, 0
    %12 = vsyncpa [#allocation4], 0
    %s13 = scalar_lea.sflag [#allocation4], 1
    %14 = vsyncpa %s13, 0
    loop: start=0, step=1, limit=4
    $region2: #{tpu_custom_call.1} parent=1 // loop_pre_header
      _
    $region3: #{tpu_custom_call.1} parent=1 // loop_header
      %s16 = sphi 0, %s20
      %p17 = scmp.ge.s32.totalorder %s16, 4
      %s26 = sphi 0, %s28
      %s29 = sphi 0, %s26
      %s30 = sphi 0, %s29
      %s46 = sphi 0, %s30
      %s50 = sphi 0, %s50
      %s52 = sphi 0, %s50
      %s53 = sphi 0, %s52
      %s67 = sphi 0, %s53
      %s71 = sphi 0, %s71
      %s73 = sphi 0, %s71
      %s74 = sphi 0, %s73
      %s88 = sphi 0, %s74
      %s92 = sphi 0, %s92
      %s94 = sphi 0, %s92
      %s95 = sphi 0, %s94
      %s109 = sphi 0, %s95
      %s115 = sphi 0, %s117
      %s118 = sphi 0, %s115
      %s119 = sphi 0, %s118
      %s135 = sphi 0, %s119
    $region4: #{tpu_custom_call.1} parent=1 // loop_header_branch
      %19 = sbr.rel (%p17) target = $region8
    $region5: #{tpu_custom_call.1} parent=1 // loop_body
      %s21 = ssub.s32 %s16, 1
      %s22 = ssub.s32 %s16, 2
      %s23 = sadd.s32 %s16, 1
      %s24 = ssub.s32 %s16, %s23
      %p25 = scmp.eq.s32.totalorder %s24, 0
      %s27 = sadd.s32 %s26, 1
      %s28 = scalar_select %p25, %s26, %s27
      %p31 = pneg %p25
      %p32 = scmp.eq.s32.totalorder %s16, 1
      %p33 = por %p31, %p32
      %p34 = scmp.ne.s32.totalorder %s26, %s29
      %p35 = scmp.eq.s32.totalorder %s16, 0
      %p36 = por %p34, %p35
      %p37 = scmp.ne.s32.totalorder %s26, %s29
      %p38 = scmp.eq.s32.totalorder %s21, 1
      %p39 = por %p37, %p38
      %p40 = scmp.ne.s32.totalorder %s29, %s30
      %p41 = scmp.eq.s32.totalorder %s21, 0
      %p42 = por %p40, %p41
      %p43 = scmp.ne.s32.totalorder %s29, %s30
      %p44 = scmp.eq.s32.totalorder %s22, 1
      %p45 = por %p43, %p44
      %p47 = scmp.ne.s32.totalorder %s30, %s46
      %p48 = scmp.eq.s32.totalorder %s22, 0
      %p49 = por %p47, %p48
      %s51 = sadd.s32 %s50, 1
      %p54 = scmp.eq.s32.totalorder %s16, 1
      %p55 = scmp.ne.s32.totalorder %s50, %s52
      %p56 = scmp.eq.s32.totalorder %s16, 0
      %p57 = por %p55, %p56
      %p58 = scmp.ne.s32.totalorder %s50, %s52
      %p59 = scmp.eq.s32.totalorder %s21, 1
      %p60 = por %p58, %p59
      %p61 = scmp.ne.s32.totalorder %s52, %s53
      %p62 = scmp.eq.s32.totalorder %s21, 0
      %p63 = por %p61, %p62
      %p64 = scmp.ne.s32.totalorder %s52, %s53
      %p65 = scmp.eq.s32.totalorder %s22, 1
      %p66 = por %p64, %p65
      %p68 = scmp.ne.s32.totalorder %s53, %s67
      %p69 = scmp.eq.s32.totalorder %s22, 0
      %p70 = por %p68, %p69
      %s72 = sadd.s32 %s71, 1
      %p75 = scmp.eq.s32.totalorder %s16, 1
      %p76 = scmp.ne.s32.totalorder %s71, %s73
      %p77 = scmp.eq.s32.totalorder %s16, 0
      %p78 = por %p76, %p77
      %p79 = scmp.ne.s32.totalorder %s71, %s73
      %p80 = scmp.eq.s32.totalorder %s21, 1
      %p81 = por %p79, %p80
      %p82 = scmp.ne.s32.totalorder %s73, %s74
      %p83 = scmp.eq.s32.totalorder %s21, 0
      %p84 = por %p82, %p83
      %p85 = scmp.ne.s32.totalorder %s73, %s74
      %p86 = scmp.eq.s32.totalorder %s22, 1
      %p87 = por %p85, %p86
      %p89 = scmp.ne.s32.totalorder %s74, %s88
      %p90 = scmp.eq.s32.totalorder %s22, 0
      %p91 = por %p89, %p90
      %s93 = sadd.s32 %s92, 1
      %p96 = scmp.eq.s32.totalorder %s16, 1
      %p97 = scmp.ne.s32.totalorder %s92, %s94
      %p98 = scmp.eq.s32.totalorder %s16, 0
      %p99 = por %p97, %p98
      %p100 = scmp.ne.s32.totalorder %s92, %s94
      %p101 = scmp.eq.s32.totalorder %s21, 1
      %p102 = por %p100, %p101
      %p103 = scmp.ne.s32.totalorder %s94, %s95
      %p104 = scmp.eq.s32.totalorder %s21, 0
      %p105 = por %p103, %p104
      %p106 = scmp.ne.s32.totalorder %s94, %s95
      %p107 = scmp.eq.s32.totalorder %s22, 1
      %p108 = por %p106, %p107
      %p110 = scmp.ne.s32.totalorder %s95, %s109
      %p111 = scmp.eq.s32.totalorder %s22, 0
      %p112 = por %p110, %p111
      %s113 = ssub.s32 %s16, %s23
      %p114 = scmp.eq.s32.totalorder %s113, 0
      %s116 = sadd.s32 %s115, 1
      %s117 = scalar_select %p114, %s115, %s116
      %p120 = pneg %p114
      %p121 = scmp.eq.s32.totalorder %s16, 1
      %p122 = por %p120, %p121
      %p123 = scmp.ne.s32.totalorder %s115, %s118
      %p124 = scmp.eq.s32.totalorder %s16, 0
      %p125 = por %p123, %p124
      %p126 = scmp.ne.s32.totalorder %s115, %s118
      %p127 = scmp.eq.s32.totalorder %s21, 1
      %p128 = por %p126, %p127
      %p129 = scmp.ne.s32.totalorder %s118, %s119
      %p130 = scmp.eq.s32.totalorder %s21, 0
      %p131 = por %p129, %p130
      %p132 = scmp.ne.s32.totalorder %s118, %s119
      %p133 = scmp.eq.s32.totalorder %s22, 1
      %p134 = por %p132, %p133
      %p136 = scmp.ne.s32.totalorder %s119, %s135
      %p137 = scmp.eq.s32.totalorder %s22, 0
      %p138 = por %p136, %p137
      %p139 = scmp.le.s32.totalorder 1, %s16
      %p140 = scmp.lt.s32.totalorder %s16, 3
      %p141 = pnand %p139, %p140
      %p142 = pneg %p141
      // Predicated region
      $region9: #{tpu_custom_call.1} parent=5 // pred_check
        _
      $region10: #{tpu_custom_call.1} parent=5 // pred_check_branch
        %144 = sbr.rel (%p141) target = $region12
      $region11: #{tpu_custom_call.1} parent=5 // pred_region
        %s145 = ssub.s32 %s16, 1
        // Predicated region
        $region13: #{tpu_custom_call.1} parent=11 // pred_check
          %p146 = pneg %p63
        $region14: #{tpu_custom_call.1} parent=11 // pred_check_branch
          %148 = sbr.rel (%p146) target = $region16
        $region15: #{tpu_custom_call.1} parent=11 // pred_region
          _
        $region16: #{tpu_custom_call.1} parent=11 // pred_fallthru
          _
        // Predicated region
        $region17: #{tpu_custom_call.1} parent=11 // pred_check
          %p149 = pneg %p84
        $region18: #{tpu_custom_call.1} parent=11 // pred_check_branch
          %151 = sbr.rel (%p149) target = $region20
        $region19: #{tpu_custom_call.1} parent=11 // pred_region
          _
        $region20: #{tpu_custom_call.1} parent=11 // pred_fallthru
          _
        // Predicated region
        $region21: #{tpu_custom_call.1} parent=11 // pred_check
          %p152 = pneg %p105
        $region22: #{tpu_custom_call.1} parent=11 // pred_check_branch
          %154 = sbr.rel (%p152) target = $region24
        $region23: #{tpu_custom_call.1} parent=11 // pred_region
          _
        $region24: #{tpu_custom_call.1} parent=11 // pred_fallthru
          _
      $region12: #{tpu_custom_call.1} parent=5 // pred_fallthru
        _
      %p155 = scmp.lt.s32.totalorder %s16, 2
      // Predicated region
      $region25: #{tpu_custom_call.1} parent=5 // pred_check
        %p156 = pneg %p155
      $region26: #{tpu_custom_call.1} parent=5 // pred_check_branch
        %158 = sbr.rel (%p156) target = $region28
      $region27: #{tpu_custom_call.1} parent=5 // pred_region
        // Predicated region
        $region29: #{tpu_custom_call.1} parent=27 // pred_check
          %p159 = pneg %p36
        $region30: #{tpu_custom_call.1} parent=27 // pred_check_branch
          %161 = sbr.rel (%p159) target = $region32
        $region31: #{tpu_custom_call.1} parent=27 // pred_region
          %s162 = sand.u32 %s26, 1
          %s163 = scalar_lea.sflag [#allocation3], %s162
          %s164 = sand.u32 %s26, 1
          %s165 = smul.addr %s164, 128
          %s166 = scalar_lea.vmem [#allocation2], %s165
          %s167 = smul.u32 16, %s16
          %169 = vsyncadd %s163, 0
          %s170 = smul.addr %s167, 8
          %s171 = scalar_lea.hbm %s0, %s170
          %s172 = sshll.u32 %s171, 4
          %s173 = int_to_ptr.hbm [resolvable:$true] %s172
          %s174 = sshll.u32 %s166, 4
          %s175 = int_to_ptr.vmem [resolvable:$true] %s174
          %180 = dma.hbm_to_vmem [thread:$0]  %s173, 2048, %s175, %s163, 128, 128, 8
        $region32: #{tpu_custom_call.1} parent=27 // pred_fallthru
          _
      $region28: #{tpu_custom_call.1} parent=5 // pred_fallthru
        _
      %p181 = scmp.le.s32.totalorder 1, %s16
      %p182 = scmp.lt.s32.totalorder %s16, 3
      %p183 = pnand %p181, %p182
      %p184 = pneg %p183
      // Predicated region
      $region33: #{tpu_custom_call.1} parent=5 // pred_check
        _
      $region34: #{tpu_custom_call.1} parent=5 // pred_check_branch
        %186 = sbr.rel (%p183) target = $region36
      $region35: #{tpu_custom_call.1} parent=5 // pred_region
        %s187 = ssub.s32 %s16, 1
        %s188 = sand.u32 %s29, 1
        %s189 = scalar_lea.sflag [#allocation3], %s188
        %s190 = sand.u32 %s29, 1
        %s191 = smul.addr %s190, 128
        %s192 = scalar_lea.vmem [#allocation2], %s191
        // Predicated region
        $region37: #{tpu_custom_call.1} parent=35 // pred_check
          %p193 = pneg %p42
        $region38: #{tpu_custom_call.1} parent=35 // pred_check_branch
          %195 = sbr.rel (%p193) target = $region40
        $region39: #{tpu_custom_call.1} parent=35 // pred_region
          %197 = dma.done %s189, 2048
        $region40: #{tpu_custom_call.1} parent=35 // pred_fallthru
          _
        %s198 = sand.u32 %s29, 1
        %s199 = scalar_lea.sflag [#allocation3], %s198
        %s200 = sand.u32 %s29, 1
        %s201 = smul.addr %s200, 128
        %s202 = scalar_lea.vmem [#allocation2], %s201
        %p203 = pneg %p42
        %p204 = pneg %p39
        %p205 = pneg %p63
        %p206 = pneg %p60
        %p207 = pneg %p84
        %p208 = pneg %p81
        %p209 = pneg %p105
        %p210 = pneg %p102
        %p211 = pneg %p131
        %p212 = pneg %p128
        %s213 = sand.u32 %s118, 1
        %s214 = scalar_lea.sflag [#allocation4], %s213
        %s215 = sand.u32 %s118, 1
        %s216 = smul.addr %s215, 8
        %s217 = scalar_lea.vmem [#allocation5], %s216
        %s218 = smul.u32 16, %s21
        %v219 = vld [vmem:[%s192] sm:$0xff]
        %v220 = vld [vmem:[%s192 + $0x8] sm:$0xff]
        %v221 = vld [vmem:[%s192 + $0x10] sm:$0xff]
        %v222 = vld [vmem:[%s192 + $0x18] sm:$0xff]
        %v223 = vld [vmem:[%s192 + $0x20] sm:$0xff]
        %v224 = vld [vmem:[%s192 + $0x28] sm:$0xff]
        %v225 = vld [vmem:[%s192 + $0x30] sm:$0xff]
        %v226 = vld [vmem:[%s192 + $0x38] sm:$0xff]
        %v227 = vld [vmem:[%s192 + $0x40] sm:$0xff]
        %v228 = vld [vmem:[%s192 + $0x48] sm:$0xff]
        %v229 = vld [vmem:[%s192 + $0x50] sm:$0xff]
        %v230 = vld [vmem:[%s192 + $0x58] sm:$0xff]
        %v231 = vld [vmem:[%s192 + $0x60] sm:$0xff]
        %v232 = vld [vmem:[%s192 + $0x68] sm:$0xff]
        %v233 = vld [vmem:[%s192 + $0x70] sm:$0xff]
        %v234 = vld [vmem:[%s192 + $0x78] sm:$0xff]
        %v235 = vld [vmem:[%s1] sm:$0xff]
        %v236 = vld [vmem:[%s1 + $0x8] sm:$0xff]
        %v237 = vld [vmem:[%s1 + $0x10] sm:$0xff]
        %v238 = vld [vmem:[%s1 + $0x18] sm:$0xff]
        %v239 = vld [vmem:[%s1 + $0x20] sm:$0xff]
        %v240 = vld [vmem:[%s1 + $0x28] sm:$0xff]
        %v241 = vld [vmem:[%s1 + $0x30] sm:$0xff]
        %v242 = vld [vmem:[%s1 + $0x38] sm:$0xff]
        %vm243 = vcmask 523264
        %v245 = vsel %vm243, %v219, 0
        %v248 = vsel %vm243, %v220, 0
        %v251 = vsel %vm243, %v221, 0
        %v254 = vsel %vm243, %v222, 0
        %v257 = vsel %vm243, %v223, 0
        %v260 = vsel %vm243, %v224, 0
        %v263 = vsel %vm243, %v225, 0
        %v266 = vsel %vm243, %v226, 0
        %v269 = vsel %vm243, %v227, 0
        %v272 = vsel %vm243, %v228, 0
        %v275 = vsel %vm243, %v229, 0
        %v278 = vsel %vm243, %v230, 0
        %v281 = vsel %vm243, %v231, 0
        %v284 = vsel %vm243, %v232, 0
        %v287 = vsel %vm243, %v233, 0
        %v290 = vsel %vm243, %v234, 0
        %292 = vmatpush.msra.mxu0 0.0
        %293 = vmatpush.msra.mxu0 0.0
        %294 = vmatpush.msra.mxu0 0.0
        %295 = vmatpush.msra.mxu0 0.0
        %296 = vmatpush.msra.mxu0 0.0
        %297 = vmatpush.msra.mxu0 0.0
        %298 = vmatpush.msra.mxu0 0.0
        %299 = vmatpush.msra.mxu0 0.0
        %300 = vmatpush.msra.mxu0 %v242
        %301 = vmatpush.msra.mxu0 %v241
        %302 = vmatpush.msra.mxu0 %v240
        %303 = vmatpush.msra.mxu0 %v239
        %304 = vmatpush.msra.mxu0 %v238
        %305 = vmatpush.msra.mxu0 %v237
        %306 = vmatpush.msra.mxu0 %v236
        %307 = vmatpush.msra.mxu0 %v235
        %308 = vmatmul.f32.gmra.mxu0 %v245
        %v309 = vpop.f32.mrf.mxu0
        %v310 = vadd.f32 0.0, %v309
        %311 = vmatmul.f32.gmra.mxu0 %v248
        %v312 = vpop.f32.mrf.mxu0
        %v313 = vadd.f32 0.0, %v312
        %314 = vmatmul.f32.gmra.mxu0 %v251
        %v315 = vpop.f32.mrf.mxu0
        %v316 = vadd.f32 0.0, %v315
        %317 = vmatmul.f32.gmra.mxu0 %v254
        %v318 = vpop.f32.mrf.mxu0
        %v319 = vadd.f32 0.0, %v318
        %320 = vmatmul.f32.gmra.mxu0 %v257
        %v321 = vpop.f32.mrf.mxu0
        %v322 = vadd.f32 0.0, %v321
        %323 = vmatmul.f32.gmra.mxu0 %v260
        %v324 = vpop.f32.mrf.mxu0
        %v325 = vadd.f32 0.0, %v324
        %326 = vmatmul.f32.gmra.mxu0 %v263
        %v327 = vpop.f32.mrf.mxu0
        %v328 = vadd.f32 0.0, %v327
        %329 = vmatmul.f32.gmra.mxu0 %v266
        %v330 = vpop.f32.mrf.mxu0
        %v331 = vadd.f32 0.0, %v330
        %332 = vmatmul.f32.gmra.mxu0 %v269
        %v333 = vpop.f32.mrf.mxu0
        %v334 = vadd.f32 0.0, %v333
        %335 = vmatmul.f32.gmra.mxu0 %v272
        %v336 = vpop.f32.mrf.mxu0
        %v337 = vadd.f32 0.0, %v336
        %338 = vmatmul.f32.gmra.mxu0 %v275
        %v339 = vpop.f32.mrf.mxu0
        %v340 = vadd.f32 0.0, %v339
        %341 = vmatmul.f32.gmra.mxu0 %v278
        %v342 = vpop.f32.mrf.mxu0
        %v343 = vadd.f32 0.0, %v342
        %344 = vmatmul.f32.gmra.mxu0 %v281
        %v345 = vpop.f32.mrf.mxu0
        %v346 = vadd.f32 0.0, %v345
        %347 = vmatmul.f32.gmra.mxu0 %v284
        %v348 = vpop.f32.mrf.mxu0
        %v349 = vadd.f32 0.0, %v348
        %350 = vmatmul.f32.gmra.mxu0 %v287
        %v351 = vpop.f32.mrf.mxu0
        %v352 = vadd.f32 0.0, %v351
        %353 = vmatmul.f32.gmra.mxu0 %v290
        %v354 = vpop.f32.mrf.mxu0
        %v355 = vadd.f32 0.0, %v354
        %356 = vdwg.mxu0
        %v357 = vld [vmem:[%s2] sm:$0xff]
        %359 = vrot.lane.b32.xlu0 %v310, 112
        %v360 = vpop.permute.xlu0 %359
        %vm361 = vcmask 130048
        %v362 = vsel %vm361, %v310, 0
        %v364 = vsel %vm361, %v360, 0
        %366 = vmatpush.xpose.msra.mxu0 0.0
        %367 = vmatpush.xpose.msra.mxu0 0.0
        %368 = vmatpush.xpose.msra.mxu0 0.0
        %369 = vmatpush.xpose.msra.mxu0 0.0
        %370 = vmatpush.xpose.msra.mxu0 0.0
        %371 = vmatpush.xpose.msra.mxu0 0.0
        %372 = vmatpush.xpose.msra.mxu0 0.0
        %373 = vmatpush.xpose.msra.mxu0 0.0
        %374 = vmatpush.xpose.msra.mxu0 0.0
        %375 = vmatpush.xpose.msra.mxu0 0.0
        %376 = vmatpush.xpose.msra.mxu0 0.0
        %377 = vmatpush.xpose.msra.mxu0 0.0
        %378 = vmatpush.xpose.msra.mxu0 0.0
        %379 = vmatpush.xpose.msra.mxu0 0.0
        %380 = vmatpush.xpose.msra.mxu0 0.0
        %381 = vmatpush.xpose.msra.mxu0 %v364
        %382 = vmatmul.f32.gmra.mxu0 %v362
        %v383 = vpop.f32.mrf.mxu0
        %v384 = vadd.f32 %v357, %v383
        %385 = vdwg.mxu0
        %387 = vrot.lane.b32.xlu0 %v313, 112
        %v388 = vpop.permute.xlu0 %387
        %v389 = vsel %vm361, %v313, 0
        %v391 = vsel %vm361, %v388, 0
        %393 = vmatpush.xpose.msra.mxu0 0.0
        %394 = vmatpush.xpose.msra.mxu0 0.0
        %395 = vmatpush.xpose.msra.mxu0 0.0
        %396 = vmatpush.xpose.msra.mxu0 0.0
        %397 = vmatpush.xpose.msra.mxu0 0.0
        %398 = vmatpush.xpose.msra.mxu0 0.0
        %399 = vmatpush.xpose.msra.mxu0 0.0
        %400 = vmatpush.xpose.msra.mxu0 0.0
        %401 = vmatpush.xpose.msra.mxu0 0.0
        %402 = vmatpush.xpose.msra.mxu0 0.0
        %403 = vmatpush.xpose.msra.mxu0 0.0
        %404 = vmatpush.xpose.msra.mxu0 0.0
        %405 = vmatpush.xpose.msra.mxu0 0.0
        %406 = vmatpush.xpose.msra.mxu0 0.0
        %407 = vmatpush.xpose.msra.mxu0 0.0
        %408 = vmatpush.xpose.msra.mxu0 %v391
        %409 = vmatmul.f32.gmra.mxu0 %v389
        %v410 = vpop.f32.mrf.mxu0
        %v411 = vadd.f32 %v357, %v410
        %412 = vdwg.mxu0
        %414 = vrot.lane.b32.xlu0 %v316, 112
        %v415 = vpop.permute.xlu0 %414
        %v416 = vsel %vm361, %v316, 0
        %v418 = vsel %vm361, %v415, 0
        %420 = vmatpush.xpose.msra.mxu0 0.0
        %421 = vmatpush.xpose.msra.mxu0 0.0
        %422 = vmatpush.xpose.msra.mxu0 0.0
        %423 = vmatpush.xpose.msra.mxu0 0.0
        %424 = vmatpush.xpose.msra.mxu0 0.0
        %425 = vmatpush.xpose.msra.mxu0 0.0
        %426 = vmatpush.xpose.msra.mxu0 0.0
        %427 = vmatpush.xpose.msra.mxu0 0.0
        %428 = vmatpush.xpose.msra.mxu0 0.0
        %429 = vmatpush.xpose.msra.mxu0 0.0
        %430 = vmatpush.xpose.msra.mxu0 0.0
        %431 = vmatpush.xpose.msra.mxu0 0.0
        %432 = vmatpush.xpose.msra.mxu0 0.0
        %433 = vmatpush.xpose.msra.mxu0 0.0
        %434 = vmatpush.xpose.msra.mxu0 0.0
        %435 = vmatpush.xpose.msra.mxu0 %v418
        %436 = vmatmul.f32.gmra.mxu0 %v416
        %v437 = vpop.f32.mrf.mxu0
        %v438 = vadd.f32 %v357, %v437
        %439 = vdwg.mxu0
        %441 = vrot.lane.b32.xlu0 %v319, 112
        %v442 = vpop.permute.xlu0 %441
        %v443 = vsel %vm361, %v319, 0
        %v445 = vsel %vm361, %v442, 0
        %447 = vmatpush.xpose.msra.mxu0 0.0
        %448 = vmatpush.xpose.msra.mxu0 0.0
        %449 = vmatpush.xpose.msra.mxu0 0.0
        %450 = vmatpush.xpose.msra.mxu0 0.0
        %451 = vmatpush.xpose.msra.mxu0 0.0
        %452 = vmatpush.xpose.msra.mxu0 0.0
        %453 = vmatpush.xpose.msra.mxu0 0.0
        %454 = vmatpush.xpose.msra.mxu0 0.0
        %455 = vmatpush.xpose.msra.mxu0 0.0
        %456 = vmatpush.xpose.msra.mxu0 0.0
        %457 = vmatpush.xpose.msra.mxu0 0.0
        %458 = vmatpush.xpose.msra.mxu0 0.0
        %459 = vmatpush.xpose.msra.mxu0 0.0
        %460 = vmatpush.xpose.msra.mxu0 0.0
        %461 = vmatpush.xpose.msra.mxu0 0.0
        %462 = vmatpush.xpose.msra.mxu0 %v445
        %463 = vmatmul.f32.gmra.mxu0 %v443
        %v464 = vpop.f32.mrf.mxu0
        %v465 = vadd.f32 %v357, %v464
        %466 = vdwg.mxu0
        %468 = vrot.lane.b32.xlu0 %v322, 112
        %v469 = vpop.permute.xlu0 %468
        %v470 = vsel %vm361, %v322, 0
        %v472 = vsel %vm361, %v469, 0
        %474 = vmatpush.xpose.msra.mxu0 0.0
        %475 = vmatpush.xpose.msra.mxu0 0.0
        %476 = vmatpush.xpose.msra.mxu0 0.0
        %477 = vmatpush.xpose.msra.mxu0 0.0
        %478 = vmatpush.xpose.msra.mxu0 0.0
        %479 = vmatpush.xpose.msra.mxu0 0.0
        %480 = vmatpush.xpose.msra.mxu0 0.0
        %481 = vmatpush.xpose.msra.mxu0 0.0
        %482 = vmatpush.xpose.msra.mxu0 0.0
        %483 = vmatpush.xpose.msra.mxu0 0.0
        %484 = vmatpush.xpose.msra.mxu0 0.0
        %485 = vmatpush.xpose.msra.mxu0 0.0
        %486 = vmatpush.xpose.msra.mxu0 0.0
        %487 = vmatpush.xpose.msra.mxu0 0.0
        %488 = vmatpush.xpose.msra.mxu0 0.0
        %489 = vmatpush.xpose.msra.mxu0 %v472
        %490 = vmatmul.f32.gmra.mxu0 %v470
        %v491 = vpop.f32.mrf.mxu0
        %v492 = vadd.f32 %v357, %v491
        %493 = vdwg.mxu0
        %495 = vrot.lane.b32.xlu0 %v325, 112
        %v496 = vpop.permute.xlu0 %495
        %v497 = vsel %vm361, %v325, 0
        %v499 = vsel %vm361, %v496, 0
        %501 = vmatpush.xpose.msra.mxu0 0.0
        %502 = vmatpush.xpose.msra.mxu0 0.0
        %503 = vmatpush.xpose.msra.mxu0 0.0
        %504 = vmatpush.xpose.msra.mxu0 0.0
        %505 = vmatpush.xpose.msra.mxu0 0.0
        %506 = vmatpush.xpose.msra.mxu0 0.0
        %507 = vmatpush.xpose.msra.mxu0 0.0
        %508 = vmatpush.xpose.msra.mxu0 0.0
        %509 = vmatpush.xpose.msra.mxu0 0.0
        %510 = vmatpush.xpose.msra.mxu0 0.0
        %511 = vmatpush.xpose.msra.mxu0 0.0
        %512 = vmatpush.xpose.msra.mxu0 0.0
        %513 = vmatpush.xpose.msra.mxu0 0.0
        %514 = vmatpush.xpose.msra.mxu0 0.0
        %515 = vmatpush.xpose.msra.mxu0 0.0
        %516 = vmatpush.xpose.msra.mxu0 %v499
        %517 = vmatmul.f32.gmra.mxu0 %v497
        %v518 = vpop.f32.mrf.mxu0
        %v519 = vadd.f32 %v357, %v518
        %520 = vdwg.mxu0
        %522 = vrot.lane.b32.xlu0 %v328, 112
        %v523 = vpop.permute.xlu0 %522
        %v524 = vsel %vm361, %v328, 0
        %v526 = vsel %vm361, %v523, 0
        %528 = vmatpush.xpose.msra.mxu0 0.0
        %529 = vmatpush.xpose.msra.mxu0 0.0
        %530 = vmatpush.xpose.msra.mxu0 0.0
        %531 = vmatpush.xpose.msra.mxu0 0.0
        %532 = vmatpush.xpose.msra.mxu0 0.0
        %533 = vmatpush.xpose.msra.mxu0 0.0
        %534 = vmatpush.xpose.msra.mxu0 0.0
        %535 = vmatpush.xpose.msra.mxu0 0.0
        %536 = vmatpush.xpose.msra.mxu0 0.0
        %537 = vmatpush.xpose.msra.mxu0 0.0
        %538 = vmatpush.xpose.msra.mxu0 0.0
        %539 = vmatpush.xpose.msra.mxu0 0.0
        %540 = vmatpush.xpose.msra.mxu0 0.0
        %541 = vmatpush.xpose.msra.mxu0 0.0
        %542 = vmatpush.xpose.msra.mxu0 0.0
        %543 = vmatpush.xpose.msra.mxu0 %v526
        %544 = vmatmul.f32.gmra.mxu0 %v524
        %v545 = vpop.f32.mrf.mxu0
        %v546 = vadd.f32 %v357, %v545
        %547 = vdwg.mxu0
        %549 = vrot.lane.b32.xlu0 %v331, 112
        %v550 = vpop.permute.xlu0 %549
        %v551 = vsel %vm361, %v331, 0
        %v553 = vsel %vm361, %v550, 0
        %555 = vmatpush.xpose.msra.mxu0 0.0
        %556 = vmatpush.xpose.msra.mxu0 0.0
        %557 = vmatpush.xpose.msra.mxu0 0.0
        %558 = vmatpush.xpose.msra.mxu0 0.0
        %559 = vmatpush.xpose.msra.mxu0 0.0
        %560 = vmatpush.xpose.msra.mxu0 0.0
        %561 = vmatpush.xpose.msra.mxu0 0.0
        %562 = vmatpush.xpose.msra.mxu0 0.0
        %563 = vmatpush.xpose.msra.mxu0 0.0
        %564 = vmatpush.xpose.msra.mxu0 0.0
        %565 = vmatpush.xpose.msra.mxu0 0.0
        %566 = vmatpush.xpose.msra.mxu0 0.0
        %567 = vmatpush.xpose.msra.mxu0 0.0
        %568 = vmatpush.xpose.msra.mxu0 0.0
        %569 = vmatpush.xpose.msra.mxu0 0.0
        %570 = vmatpush.xpose.msra.mxu0 %v553
        %571 = vmatmul.f32.gmra.mxu0 %v551
        %v572 = vpop.f32.mrf.mxu0
        %v573 = vadd.f32 %v357, %v572
        %574 = vdwg.mxu0
        %576 = vrot.lane.b32.xlu0 %v334, 112
        %v577 = vpop.permute.xlu0 %576
        %v578 = vsel %vm361, %v334, 0
        %v580 = vsel %vm361, %v577, 0
        %582 = vmatpush.xpose.msra.mxu0 0.0
        %583 = vmatpush.xpose.msra.mxu0 0.0
        %584 = vmatpush.xpose.msra.mxu0 0.0
        %585 = vmatpush.xpose.msra.mxu0 0.0
        %586 = vmatpush.xpose.msra.mxu0 0.0
        %587 = vmatpush.xpose.msra.mxu0 0.0
        %588 = vmatpush.xpose.msra.mxu0 0.0
        %589 = vmatpush.xpose.msra.mxu0 0.0
        %590 = vmatpush.xpose.msra.mxu0 0.0
        %591 = vmatpush.xpose.msra.mxu0 0.0
        %592 = vmatpush.xpose.msra.mxu0 0.0
        %593 = vmatpush.xpose.msra.mxu0 0.0
        %594 = vmatpush.xpose.msra.mxu0 0.0
        %595 = vmatpush.xpose.msra.mxu0 0.0
        %596 = vmatpush.xpose.msra.mxu0 0.0
        %597 = vmatpush.xpose.msra.mxu0 %v580
        %598 = vmatmul.f32.gmra.mxu0 %v578
        %v599 = vpop.f32.mrf.mxu0
        %v600 = vadd.f32 %v357, %v599
        %601 = vdwg.mxu0
        %603 = vrot.lane.b32.xlu0 %v337, 112
        %v604 = vpop.permute.xlu0 %603
        %v605 = vsel %vm361, %v337, 0
        %v607 = vsel %vm361, %v604, 0
        %609 = vmatpush.xpose.msra.mxu0 0.0
        %610 = vmatpush.xpose.msra.mxu0 0.0
        %611 = vmatpush.xpose.msra.mxu0 0.0
        %612 = vmatpush.xpose.msra.mxu0 0.0
        %613 = vmatpush.xpose.msra.mxu0 0.0
        %614 = vmatpush.xpose.msra.mxu0 0.0
        %615 = vmatpush.xpose.msra.mxu0 0.0
        %616 = vmatpush.xpose.msra.mxu0 0.0
        %617 = vmatpush.xpose.msra.mxu0 0.0
        %618 = vmatpush.xpose.msra.mxu0 0.0
        %619 = vmatpush.xpose.msra.mxu0 0.0
        %620 = vmatpush.xpose.msra.mxu0 0.0
        %621 = vmatpush.xpose.msra.mxu0 0.0
        %622 = vmatpush.xpose.msra.mxu0 0.0
        %623 = vmatpush.xpose.msra.mxu0 0.0
        %624 = vmatpush.xpose.msra.mxu0 %v607
        %625 = vmatmul.f32.gmra.mxu0 %v605
        %v626 = vpop.f32.mrf.mxu0
        %v627 = vadd.f32 %v357, %v626
        %628 = vdwg.mxu0
        %630 = vrot.lane.b32.xlu0 %v340, 112
        %v631 = vpop.permute.xlu0 %630
        %v632 = vsel %vm361, %v340, 0
        %v634 = vsel %vm361, %v631, 0
        %636 = vmatpush.xpose.msra.mxu0 0.0
        %637 = vmatpush.xpose.msra.mxu0 0.0
        %638 = vmatpush.xpose.msra.mxu0 0.0
        %639 = vmatpush.xpose.msra.mxu0 0.0
        %640 = vmatpush.xpose.msra.mxu0 0.0
        %641 = vmatpush.xpose.msra.mxu0 0.0
        %642 = vmatpush.xpose.msra.mxu0 0.0
        %643 = vmatpush.xpose.msra.mxu0 0.0
        %644 = vmatpush.xpose.msra.mxu0 0.0
        %645 = vmatpush.xpose.msra.mxu0 0.0
        %646 = vmatpush.xpose.msra.mxu0 0.0
        %647 = vmatpush.xpose.msra.mxu0 0.0
        %648 = vmatpush.xpose.msra.mxu0 0.0
        %649 = vmatpush.xpose.msra.mxu0 0.0
        %650 = vmatpush.xpose.msra.mxu0 0.0
        %651 = vmatpush.xpose.msra.mxu0 %v634
        %652 = vmatmul.f32.gmra.mxu0 %v632
        %v653 = vpop.f32.mrf.mxu0
        %v654 = vadd.f32 %v357, %v653
        %655 = vdwg.mxu0
        %657 = vrot.lane.b32.xlu0 %v343, 112
        %v658 = vpop.permute.xlu0 %657
        %v659 = vsel %vm361, %v343, 0
        %v661 = vsel %vm361, %v658, 0
        %663 = vmatpush.xpose.msra.mxu0 0.0
        %664 = vmatpush.xpose.msra.mxu0 0.0
        %665 = vmatpush.xpose.msra.mxu0 0.0
        %666 = vmatpush.xpose.msra.mxu0 0.0
        %667 = vmatpush.xpose.msra.mxu0 0.0
        %668 = vmatpush.xpose.msra.mxu0 0.0
        %669 = vmatpush.xpose.msra.mxu0 0.0
        %670 = vmatpush.xpose.msra.mxu0 0.0
        %671 = vmatpush.xpose.msra.mxu0 0.0
        %672 = vmatpush.xpose.msra.mxu0 0.0
        %673 = vmatpush.xpose.msra.mxu0 0.0
        %674 = vmatpush.xpose.msra.mxu0 0.0
        %675 = vmatpush.xpose.msra.mxu0 0.0
        %676 = vmatpush.xpose.msra.mxu0 0.0
        %677 = vmatpush.xpose.msra.mxu0 0.0
        %678 = vmatpush.xpose.msra.mxu0 %v661
        %679 = vmatmul.f32.gmra.mxu0 %v659
        %v680 = vpop.f32.mrf.mxu0
        %v681 = vadd.f32 %v357, %v680
        %682 = vdwg.mxu0
        %684 = vrot.lane.b32.xlu0 %v346, 112
        %v685 = vpop.permute.xlu0 %684
        %v686 = vsel %vm361, %v346, 0
        %v688 = vsel %vm361, %v685, 0
        %690 = vmatpush.xpose.msra.mxu0 0.0
        %691 = vmatpush.xpose.msra.mxu0 0.0
        %692 = vmatpush.xpose.msra.mxu0 0.0
        %693 = vmatpush.xpose.msra.mxu0 0.0
        %694 = vmatpush.xpose.msra.mxu0 0.0
        %695 = vmatpush.xpose.msra.mxu0 0.0
        %696 = vmatpush.xpose.msra.mxu0 0.0
        %697 = vmatpush.xpose.msra.mxu0 0.0
        %698 = vmatpush.xpose.msra.mxu0 0.0
        %699 = vmatpush.xpose.msra.mxu0 0.0
        %700 = vmatpush.xpose.msra.mxu0 0.0
        %701 = vmatpush.xpose.msra.mxu0 0.0
        %702 = vmatpush.xpose.msra.mxu0 0.0
        %703 = vmatpush.xpose.msra.mxu0 0.0
        %704 = vmatpush.xpose.msra.mxu0 0.0
        %705 = vmatpush.xpose.msra.mxu0 %v688
        %706 = vmatmul.f32.gmra.mxu0 %v686
        %v707 = vpop.f32.mrf.mxu0
        %v708 = vadd.f32 %v357, %v707
        %709 = vdwg.mxu0
        %711 = vrot.lane.b32.xlu0 %v349, 112
        %v712 = vpop.permute.xlu0 %711
        %v713 = vsel %vm361, %v349, 0
        %v715 = vsel %vm361, %v712, 0
        %717 = vmatpush.xpose.msra.mxu0 0.0
        %718 = vmatpush.xpose.msra.mxu0 0.0
        %719 = vmatpush.xpose.msra.mxu0 0.0
        %720 = vmatpush.xpose.msra.mxu0 0.0
        %721 = vmatpush.xpose.msra.mxu0 0.0
        %722 = vmatpush.xpose.msra.mxu0 0.0
        %723 = vmatpush.xpose.msra.mxu0 0.0
        %724 = vmatpush.xpose.msra.mxu0 0.0
        %725 = vmatpush.xpose.msra.mxu0 0.0
        %726 = vmatpush.xpose.msra.mxu0 0.0
        %727 = vmatpush.xpose.msra.mxu0 0.0
        %728 = vmatpush.xpose.msra.mxu0 0.0
        %729 = vmatpush.xpose.msra.mxu0 0.0
        %730 = vmatpush.xpose.msra.mxu0 0.0
        %731 = vmatpush.xpose.msra.mxu0 0.0
        %732 = vmatpush.xpose.msra.mxu0 %v715
        %733 = vmatmul.f32.gmra.mxu0 %v713
        %v734 = vpop.f32.mrf.mxu0
        %v735 = vadd.f32 %v357, %v734
        %736 = vdwg.mxu0
        %738 = vrot.lane.b32.xlu0 %v352, 112
        %v739 = vpop.permute.xlu0 %738
        %v740 = vsel %vm361, %v352, 0
        %v742 = vsel %vm361, %v739, 0
        %744 = vmatpush.xpose.msra.mxu0 0.0
        %745 = vmatpush.xpose.msra.mxu0 0.0
        %746 = vmatpush.xpose.msra.mxu0 0.0
        %747 = vmatpush.xpose.msra.mxu0 0.0
        %748 = vmatpush.xpose.msra.mxu0 0.0
        %749 = vmatpush.xpose.msra.mxu0 0.0
        %750 = vmatpush.xpose.msra.mxu0 0.0
        %751 = vmatpush.xpose.msra.mxu0 0.0
        %752 = vmatpush.xpose.msra.mxu0 0.0
        %753 = vmatpush.xpose.msra.mxu0 0.0
        %754 = vmatpush.xpose.msra.mxu0 0.0
        %755 = vmatpush.xpose.msra.mxu0 0.0
        %756 = vmatpush.xpose.msra.mxu0 0.0
        %757 = vmatpush.xpose.msra.mxu0 0.0
        %758 = vmatpush.xpose.msra.mxu0 0.0
        %759 = vmatpush.xpose.msra.mxu0 %v742
        %760 = vmatmul.f32.gmra.mxu0 %v740
        %v761 = vpop.f32.mrf.mxu0
        %v762 = vadd.f32 %v357, %v761
        %763 = vdwg.mxu0
        %765 = vrot.lane.b32.xlu0 %v355, 112
        %v766 = vpop.permute.xlu0 %765
        %v767 = vsel %vm361, %v355, 0
        %v769 = vsel %vm361, %v766, 0
        %771 = vmatpush.xpose.msra.mxu0 0.0
        %772 = vmatpush.xpose.msra.mxu0 0.0
        %773 = vmatpush.xpose.msra.mxu0 0.0
        %774 = vmatpush.xpose.msra.mxu0 0.0
        %775 = vmatpush.xpose.msra.mxu0 0.0
        %776 = vmatpush.xpose.msra.mxu0 0.0
        %777 = vmatpush.xpose.msra.mxu0 0.0
        %778 = vmatpush.xpose.msra.mxu0 0.0
        %779 = vmatpush.xpose.msra.mxu0 0.0
        %780 = vmatpush.xpose.msra.mxu0 0.0
        %781 = vmatpush.xpose.msra.mxu0 0.0
        %782 = vmatpush.xpose.msra.mxu0 0.0
        %783 = vmatpush.xpose.msra.mxu0 0.0
        %784 = vmatpush.xpose.msra.mxu0 0.0
        %785 = vmatpush.xpose.msra.mxu0 0.0
        %786 = vmatpush.xpose.msra.mxu0 %v769
        %787 = vmatmul.f32.gmra.mxu0 %v767
        %v788 = vpop.f32.mrf.mxu0
        %v789 = vadd.f32 %v357, %v788
        %790 = vdwg.mxu0
        %v791 = vsub.f32 0.0, %v384
        %v792 = vsub.f32 0.0, %v411
        %v793 = vsub.f32 0.0, %v438
        %v794 = vsub.f32 0.0, %v465
        %v795 = vsub.f32 0.0, %v492
        %v796 = vsub.f32 0.0, %v519
        %v797 = vsub.f32 0.0, %v546
        %v798 = vsub.f32 0.0, %v573
        %v799 = vsub.f32 0.0, %v600
        %v800 = vsub.f32 0.0, %v627
        %v801 = vsub.f32 0.0, %v654
        %v802 = vsub.f32 0.0, %v681
        %v803 = vsub.f32 0.0, %v708
        %v804 = vsub.f32 0.0, %v735
        %v805 = vsub.f32 0.0, %v762
        %v806 = vsub.f32 0.0, %v789
        %v807 = vmul.f32 %v791, 1.442695
        %v808 = vpow.pop %v807
        %v809 = vmul.f32 %v792, 1.442695
        %v810 = vpow.pop %v809
        %v811 = vmul.f32 %v793, 1.442695
        %v812 = vpow.pop %v811
        %v813 = vmul.f32 %v794, 1.442695
        %v814 = vpow.pop %v813
        %v815 = vmul.f32 %v795, 1.442695
        %v816 = vpow.pop %v815
        %v817 = vmul.f32 %v796, 1.442695
        %v818 = vpow.pop %v817
        %v819 = vmul.f32 %v797, 1.442695
        %v820 = vpow.pop %v819
        %v821 = vmul.f32 %v798, 1.442695
        %v822 = vpow.pop %v821
        %v823 = vmul.f32 %v799, 1.442695
        %v824 = vpow.pop %v823
        %v825 = vmul.f32 %v800, 1.442695
        %v826 = vpow.pop %v825
        %v827 = vmul.f32 %v801, 1.442695
        %v828 = vpow.pop %v827
        %v829 = vmul.f32 %v802, 1.442695
        %v830 = vpow.pop %v829
        %v831 = vmul.f32 %v803, 1.442695
        %v832 = vpow.pop %v831
        %v833 = vmul.f32 %v804, 1.442695
        %v834 = vpow.pop %v833
        %v835 = vmul.f32 %v805, 1.442695
        %v836 = vpow.pop %v835
        %v837 = vmul.f32 %v806, 1.442695
        %v838 = vpow.pop %v837
        %v839 = vadd.f32 %v808, 1.0
        %v840 = vadd.f32 %v810, 1.0
        %v841 = vadd.f32 %v812, 1.0
        %v842 = vadd.f32 %v814, 1.0
        %v843 = vadd.f32 %v816, 1.0
        %v844 = vadd.f32 %v818, 1.0
        %v845 = vadd.f32 %v820, 1.0
        %v846 = vadd.f32 %v822, 1.0
        %v847 = vadd.f32 %v824, 1.0
        %v848 = vadd.f32 %v826, 1.0
        %v849 = vadd.f32 %v828, 1.0
        %v850 = vadd.f32 %v830, 1.0
        %v851 = vadd.f32 %v832, 1.0
        %v852 = vadd.f32 %v834, 1.0
        %v853 = vadd.f32 %v836, 1.0
        %v854 = vadd.f32 %v838, 1.0
        %v855 = vrcp.pop %v839
        %v856 = vmul.f32 %v839, %v855
        %v857 = vsub.f32 1.0, %v856
        %v858 = vmul.f32 %v855, %v857
        %v859 = vadd.f32 %v855, %v858
        %vm860 = vweird.f32 %v839
        %vm861 = vweird.f32 %v855
        %vm862 = vmor %vm860, %vm861
        %v863 = vsel %vm862, %v855, %v859
        %v864 = vand.u32 2147483647, %v839
        %vm865 = vcmp.eq.f32.partialorder %v864, 8.507059e+37
        %v866 = vand.u32 %v839, 2147483648
        %v867 = vor.u32 1.1754944e-38, %v866
        %v868 = vsel %vm865, %v867, %v863
        %v869 = vmul.f32 1.0, %v868
        %v870 = vrcp.pop %v840
        %v871 = vmul.f32 %v840, %v870
        %v872 = vsub.f32 1.0, %v871
        %v873 = vmul.f32 %v870, %v872
        %v874 = vadd.f32 %v870, %v873
        %vm875 = vweird.f32 %v840
        %vm876 = vweird.f32 %v870
        %vm877 = vmor %vm875, %vm876
        %v878 = vsel %vm877, %v870, %v874
        %v879 = vand.u32 2147483647, %v840
        %vm880 = vcmp.eq.f32.partialorder %v879, 8.507059e+37
        %v881 = vand.u32 %v840, 2147483648
        %v882 = vor.u32 1.1754944e-38, %v881
        %v883 = vsel %vm880, %v882, %v878
        %v884 = vmul.f32 1.0, %v883
        %v885 = vrcp.pop %v841
        %v886 = vmul.f32 %v841, %v885
        %v887 = vsub.f32 1.0, %v886
        %v888 = vmul.f32 %v885, %v887
        %v889 = vadd.f32 %v885, %v888
        %vm890 = vweird.f32 %v841
        %vm891 = vweird.f32 %v885
        %vm892 = vmor %vm890, %vm891
        %v893 = vsel %vm892, %v885, %v889
        %v894 = vand.u32 2147483647, %v841
        %vm895 = vcmp.eq.f32.partialorder %v894, 8.507059e+37
        %v896 = vand.u32 %v841, 2147483648
        %v897 = vor.u32 1.1754944e-38, %v896
        %v898 = vsel %vm895, %v897, %v893
        %v899 = vmul.f32 1.0, %v898
        %v900 = vrcp.pop %v842
        %v901 = vmul.f32 %v842, %v900
        %v902 = vsub.f32 1.0, %v901
        %v903 = vmul.f32 %v900, %v902
        %v904 = vadd.f32 %v900, %v903
        %vm905 = vweird.f32 %v842
        %vm906 = vweird.f32 %v900
        %vm907 = vmor %vm905, %vm906
        %v908 = vsel %vm907, %v900, %v904
        %v909 = vand.u32 2147483647, %v842
        %vm910 = vcmp.eq.f32.partialorder %v909, 8.507059e+37
        %v911 = vand.u32 %v842, 2147483648
        %v912 = vor.u32 1.1754944e-38, %v911
        %v913 = vsel %vm910, %v912, %v908
        %v914 = vmul.f32 1.0, %v913
        %v915 = vrcp.pop %v843
        %v916 = vmul.f32 %v843, %v915
        %v917 = vsub.f32 1.0, %v916
        %v918 = vmul.f32 %v915, %v917
        %v919 = vadd.f32 %v915, %v918
        %vm920 = vweird.f32 %v843
        %vm921 = vweird.f32 %v915
        %vm922 = vmor %vm920, %vm921
        %v923 = vsel %vm922, %v915, %v919
        %v924 = vand.u32 2147483647, %v843
        %vm925 = vcmp.eq.f32.partialorder %v924, 8.507059e+37
        %v926 = vand.u32 %v843, 2147483648
        %v927 = vor.u32 1.1754944e-38, %v926
        %v928 = vsel %vm925, %v927, %v923
        %v929 = vmul.f32 1.0, %v928
        %v930 = vrcp.pop %v844
        %v931 = vmul.f32 %v844, %v930
        %v932 = vsub.f32 1.0, %v931
        %v933 = vmul.f32 %v930, %v932
        %v934 = vadd.f32 %v930, %v933
        %vm935 = vweird.f32 %v844
        %vm936 = vweird.f32 %v930
        %vm937 = vmor %vm935, %vm936
        %v938 = vsel %vm937, %v930, %v934
        %v939 = vand.u32 2147483647, %v844
        %vm940 = vcmp.eq.f32.partialorder %v939, 8.507059e+37
        %v941 = vand.u32 %v844, 2147483648
        %v942 = vor.u32 1.1754944e-38, %v941
        %v943 = vsel %vm940, %v942, %v938
        %v944 = vmul.f32 1.0, %v943
        %v945 = vrcp.pop %v845
        %v946 = vmul.f32 %v845, %v945
        %v947 = vsub.f32 1.0, %v946
        %v948 = vmul.f32 %v945, %v947
        %v949 = vadd.f32 %v945, %v948
        %vm950 = vweird.f32 %v845
        %vm951 = vweird.f32 %v945
        %vm952 = vmor %vm950, %vm951
        %v953 = vsel %vm952, %v945, %v949
        %v954 = vand.u32 2147483647, %v845
        %vm955 = vcmp.eq.f32.partialorder %v954, 8.507059e+37
        %v956 = vand.u32 %v845, 2147483648
        %v957 = vor.u32 1.1754944e-38, %v956
        %v958 = vsel %vm955, %v957, %v953
        %v959 = vmul.f32 1.0, %v958
        %v960 = vrcp.pop %v846
        %v961 = vmul.f32 %v846, %v960
        %v962 = vsub.f32 1.0, %v961
        %v963 = vmul.f32 %v960, %v962
        %v964 = vadd.f32 %v960, %v963
        %vm965 = vweird.f32 %v846
        %vm966 = vweird.f32 %v960
        %vm967 = vmor %vm965, %vm966
        %v968 = vsel %vm967, %v960, %v964
        %v969 = vand.u32 2147483647, %v846
        %vm970 = vcmp.eq.f32.partialorder %v969, 8.507059e+37
        %v971 = vand.u32 %v846, 2147483648
        %v972 = vor.u32 1.1754944e-38, %v971
        %v973 = vsel %vm970, %v972, %v968
        %v974 = vmul.f32 1.0, %v973
        %v975 = vrcp.pop %v847
        %v976 = vmul.f32 %v847, %v975
        %v977 = vsub.f32 1.0, %v976
        %v978 = vmul.f32 %v975, %v977
        %v979 = vadd.f32 %v975, %v978
        %vm980 = vweird.f32 %v847
        %vm981 = vweird.f32 %v975
        %vm982 = vmor %vm980, %vm981
        %v983 = vsel %vm982, %v975, %v979
        %v984 = vand.u32 2147483647, %v847
        %vm985 = vcmp.eq.f32.partialorder %v984, 8.507059e+37
        %v986 = vand.u32 %v847, 2147483648
        %v987 = vor.u32 1.1754944e-38, %v986
        %v988 = vsel %vm985, %v987, %v983
        %v989 = vmul.f32 1.0, %v988
        %v990 = vrcp.pop %v848
        %v991 = vmul.f32 %v848, %v990
        %v992 = vsub.f32 1.0, %v991
        %v993 = vmul.f32 %v990, %v992
        %v994 = vadd.f32 %v990, %v993
        %vm995 = vweird.f32 %v848
        %vm996 = vweird.f32 %v990
        %vm997 = vmor %vm995, %vm996
        %v998 = vsel %vm997, %v990, %v994
        %v999 = vand.u32 2147483647, %v848
        %vm1000 = vcmp.eq.f32.partialorder %v999, 8.507059e+37
        %v1001 = vand.u32 %v848, 2147483648
        %v1002 = vor.u32 1.1754944e-38, %v1001
        %v1003 = vsel %vm1000, %v1002, %v998
        %v1004 = vmul.f32 1.0, %v1003
        %v1005 = vrcp.pop %v849
        %v1006 = vmul.f32 %v849, %v1005
        %v1007 = vsub.f32 1.0, %v1006
        %v1008 = vmul.f32 %v1005, %v1007
        %v1009 = vadd.f32 %v1005, %v1008
        %vm1010 = vweird.f32 %v849
        %vm1011 = vweird.f32 %v1005
        %vm1012 = vmor %vm1010, %vm1011
        %v1013 = vsel %vm1012, %v1005, %v1009
        %v1014 = vand.u32 2147483647, %v849
        %vm1015 = vcmp.eq.f32.partialorder %v1014, 8.507059e+37
        %v1016 = vand.u32 %v849, 2147483648
        %v1017 = vor.u32 1.1754944e-38, %v1016
        %v1018 = vsel %vm1015, %v1017, %v1013
        %v1019 = vmul.f32 1.0, %v1018
        %v1020 = vrcp.pop %v850
        %v1021 = vmul.f32 %v850, %v1020
        %v1022 = vsub.f32 1.0, %v1021
        %v1023 = vmul.f32 %v1020, %v1022
        %v1024 = vadd.f32 %v1020, %v1023
        %vm1025 = vweird.f32 %v850
        %vm1026 = vweird.f32 %v1020
        %vm1027 = vmor %vm1025, %vm1026
        %v1028 = vsel %vm1027, %v1020, %v1024
        %v1029 = vand.u32 2147483647, %v850
        %vm1030 = vcmp.eq.f32.partialorder %v1029, 8.507059e+37
        %v1031 = vand.u32 %v850, 2147483648
        %v1032 = vor.u32 1.1754944e-38, %v1031
        %v1033 = vsel %vm1030, %v1032, %v1028
        %v1034 = vmul.f32 1.0, %v1033
        %v1035 = vrcp.pop %v851
        %v1036 = vmul.f32 %v851, %v1035
        %v1037 = vsub.f32 1.0, %v1036
        %v1038 = vmul.f32 %v1035, %v1037
        %v1039 = vadd.f32 %v1035, %v1038
        %vm1040 = vweird.f32 %v851
        %vm1041 = vweird.f32 %v1035
        %vm1042 = vmor %vm1040, %vm1041
        %v1043 = vsel %vm1042, %v1035, %v1039
        %v1044 = vand.u32 2147483647, %v851
        %vm1045 = vcmp.eq.f32.partialorder %v1044, 8.507059e+37
        %v1046 = vand.u32 %v851, 2147483648
        %v1047 = vor.u32 1.1754944e-38, %v1046
        %v1048 = vsel %vm1045, %v1047, %v1043
        %v1049 = vmul.f32 1.0, %v1048
        %v1050 = vrcp.pop %v852
        %v1051 = vmul.f32 %v852, %v1050
        %v1052 = vsub.f32 1.0, %v1051
        %v1053 = vmul.f32 %v1050, %v1052
        %v1054 = vadd.f32 %v1050, %v1053
        %vm1055 = vweird.f32 %v852
        %vm1056 = vweird.f32 %v1050
        %vm1057 = vmor %vm1055, %vm1056
        %v1058 = vsel %vm1057, %v1050, %v1054
        %v1059 = vand.u32 2147483647, %v852
        %vm1060 = vcmp.eq.f32.partialorder %v1059, 8.507059e+37
        %v1061 = vand.u32 %v852, 2147483648
        %v1062 = vor.u32 1.1754944e-38, %v1061
        %v1063 = vsel %vm1060, %v1062, %v1058
        %v1064 = vmul.f32 1.0, %v1063
        %v1065 = vrcp.pop %v853
        %v1066 = vmul.f32 %v853, %v1065
        %v1067 = vsub.f32 1.0, %v1066
        %v1068 = vmul.f32 %v1065, %v1067
        %v1069 = vadd.f32 %v1065, %v1068
        %vm1070 = vweird.f32 %v853
        %vm1071 = vweird.f32 %v1065
        %vm1072 = vmor %vm1070, %vm1071
        %v1073 = vsel %vm1072, %v1065, %v1069
        %v1074 = vand.u32 2147483647, %v853
        %vm1075 = vcmp.eq.f32.partialorder %v1074, 8.507059e+37
        %v1076 = vand.u32 %v853, 2147483648
        %v1077 = vor.u32 1.1754944e-38, %v1076
        %v1078 = vsel %vm1075, %v1077, %v1073
        %v1079 = vmul.f32 1.0, %v1078
        %v1080 = vrcp.pop %v854
        %v1081 = vmul.f32 %v854, %v1080
        %v1082 = vsub.f32 1.0, %v1081
        %v1083 = vmul.f32 %v1080, %v1082
        %v1084 = vadd.f32 %v1080, %v1083
        %vm1085 = vweird.f32 %v854
        %vm1086 = vweird.f32 %v1080
        %vm1087 = vmor %vm1085, %vm1086
        %v1088 = vsel %vm1087, %v1080, %v1084
        %v1089 = vand.u32 2147483647, %v854
        %vm1090 = vcmp.eq.f32.partialorder %v1089, 8.507059e+37
        %v1091 = vand.u32 %v854, 2147483648
        %v1092 = vor.u32 1.1754944e-38, %v1091
        %v1093 = vsel %vm1090, %v1092, %v1088
        %v1094 = vmul.f32 1.0, %v1093
        %1096 = vrot.lane.b32.xlu0 %v884, 8
        %v1097 = vpop.permute.xlu0 %1096
        %1100 = vrot.lane.b32.xlu0 %v899, 16
        %v1101 = vpop.permute.xlu0 %1100
        %1104 = vrot.lane.b32.xlu0 %v914, 24
        %v1105 = vpop.permute.xlu0 %1104
        %1108 = vrot.lane.b32.xlu0 %v929, 32
        %v1109 = vpop.permute.xlu0 %1108
        %1112 = vrot.lane.b32.xlu0 %v944, 40
        %v1113 = vpop.permute.xlu0 %1112
        %1116 = vrot.lane.b32.xlu0 %v959, 48
        %v1117 = vpop.permute.xlu0 %1116
        %1120 = vrot.lane.b32.xlu0 %v974, 56
        %v1121 = vpop.permute.xlu0 %1120
        %1124 = vrot.lane.b32.xlu0 %v989, 64
        %v1125 = vpop.permute.xlu0 %1124
        %1128 = vrot.lane.b32.xlu0 %v1004, 72
        %v1129 = vpop.permute.xlu0 %1128
        %1132 = vrot.lane.b32.xlu0 %v1019, 80
        %v1133 = vpop.permute.xlu0 %1132
        %1136 = vrot.lane.b32.xlu0 %v1034, 88
        %v1137 = vpop.permute.xlu0 %1136
        %1140 = vrot.lane.b32.xlu0 %v1049, 96
        %v1141 = vpop.permute.xlu0 %1140
        %1144 = vrot.lane.b32.xlu0 %v1064, 104
        %v1145 = vpop.permute.xlu0 %1144
        %1148 = vrot.lane.b32.xlu0 %v1079, 112
        %v1149 = vpop.permute.xlu0 %1148
        %1152 = vrot.lane.b32.xlu0 %v1094, 120
        %v1153 = vpop.permute.xlu0 %1152
        %vm1155 = vcmask 64512
        %v1156 = vsel %vm1155, %v869, %v1097
        %v1157 = vsel %vm361, %v1156, %v1101
        %vm1158 = vcmask 195584
        %v1159 = vsel %vm1158, %v1157, %v1105
        %vm1160 = vcmask 261120
        %v1161 = vsel %vm1160, %v1159, %v1109
        %vm1162 = vcmask 326656
        %v1163 = vsel %vm1162, %v1161, %v1113
        %vm1164 = vcmask 392192
        %v1165 = vsel %vm1164, %v1163, %v1117
        %vm1166 = vcmask 457728
        %v1167 = vsel %vm1166, %v1165, %v1121
        %v1168 = vsel %vm243, %v1167, %v1125
        %vm1169 = vcmask 588800
        %v1170 = vsel %vm1169, %v1168, %v1129
        %vm1171 = vcmask 654336
        %v1172 = vsel %vm1171, %v1170, %v1133
        %vm1173 = vcmask 719872
        %v1174 = vsel %vm1173, %v1172, %v1137
        %vm1175 = vcmask 785408
        %v1176 = vsel %vm1175, %v1174, %v1141
        %vm1177 = vcmask 850944
        %v1178 = vsel %vm1177, %v1176, %v1145
        %vm1179 = vcmask 916480
        %v1180 = vsel %vm1179, %v1178, %v1149
        %vm1181 = vcmask 982016
        %v1182 = vsel %vm1181, %v1180, %v1153
        %v1183 = vld [vmem:[%s3] sm:$0xff]
        %v1185 = vsel %vm1155, %v1183, 0
        %1187 = vmatpush.msra.mxu0 0.0
        %1188 = vmatpush.msra.mxu0 0.0
        %1189 = vmatpush.msra.mxu0 0.0
        %1190 = vmatpush.msra.mxu0 0.0
        %1191 = vmatpush.msra.mxu0 0.0
        %1192 = vmatpush.msra.mxu0 0.0
        %1193 = vmatpush.msra.mxu0 0.0
        %1194 = vmatpush.msra.mxu0 0.0
        %1195 = vmatpush.msra.mxu0 0.0
        %1196 = vmatpush.msra.mxu0 0.0
        %1197 = vmatpush.msra.mxu0 0.0
        %1198 = vmatpush.msra.mxu0 0.0
        %1199 = vmatpush.msra.mxu0 0.0
        %1200 = vmatpush.msra.mxu0 0.0
        %1201 = vmatpush.msra.mxu0 0.0
        %1202 = vmatpush.msra.mxu0 %v1182
        %1203 = vmatmul.f32.gmra.mxu0 %v1185
        %v1204 = vpop.f32.mrf.mxu0
        %v1205 = vadd.f32 0.0, %v1204
        %1206 = vdwg.mxu0
        %v1207 = vrot.slane %v1205, 4
        %v1208 = vmax.f32 %v1205, %v1207
        %v1209 = vrot.slane %v1208, 2
        %v1210 = vmax.f32 %v1208, %v1209
        %v1211 = vrot.slane %v1210, 1
        %v1212 = vmax.f32 %v1210, %v1211
        %v1213 = vsub.f32 %v1205, %v1212
        %v1214 = vmul.f32 %v1213, 1.442695
        %v1215 = vpow.pop %v1214
        %v1216 = vrot.slane %v1215, 4
        %v1217 = vadd.f32 %v1215, %v1216
        %v1218 = vrot.slane %v1217, 2
        %v1219 = vadd.f32 %v1217, %v1218
        %v1220 = vrot.slane %v1219, 1
        %v1221 = vadd.f32 %v1219, %v1220
        %v1222 = vrcp.pop %v1221
        %v1223 = vmul.f32 %v1221, %v1222
        %v1224 = vsub.f32 1.0, %v1223
        %v1225 = vmul.f32 %v1222, %v1224
        %v1226 = vadd.f32 %v1222, %v1225
        %vm1227 = vweird.f32 %v1221
        %vm1228 = vweird.f32 %v1222
        %vm1229 = vmor %vm1227, %vm1228
        %v1230 = vsel %vm1229, %v1222, %v1226
        %v1231 = vand.u32 2147483647, %v1221
        %vm1232 = vcmp.eq.f32.partialorder %v1231, 8.507059e+37
        %v1233 = vand.u32 %v1221, 2147483648
        %v1234 = vor.u32 1.1754944e-38, %v1233
        %v1235 = vsel %vm1232, %v1234, %v1230
        %v1236 = vmul.f32 %v1215, %v1235
        %1237 = vst [vmem:[%s217] sm:$0xff] %v1236
        %s1238 = sand.u32 %s118, 1
        %s1239 = scalar_lea.sflag [#allocation4], %s1238
        %s1240 = sand.u32 %s118, 1
        %s1241 = smul.addr %s1240, 8
        %s1242 = scalar_lea.vmem [#allocation5], %s1241
        // Predicated region
        $region41: #{tpu_custom_call.1} parent=35 // pred_check
          %p1243 = pneg %p128
        $region42: #{tpu_custom_call.1} parent=35 // pred_check_branch
          %1245 = sbr.rel (%p1243) target = $region44
        $region43: #{tpu_custom_call.1} parent=35 // pred_region
          %1247 = vsyncadd %s1239, 0
          %s1248 = smul.addr %s21, 8
          %s1249 = scalar_lea.hbm %s4, %s1248
          %s1251 = sshll.u32 %s1242, 4
          %s1252 = int_to_ptr.vmem [resolvable:$true] %s1251
          %s1253 = sshll.u32 %s1249, 4
          %s1254 = int_to_ptr.hbm [resolvable:$true] %s1253
          %1256 = dma.vmem_to_hbm [thread:$0]  %s1252, 128, %s1254, %s1239
        $region44: #{tpu_custom_call.1} parent=35 // pred_fallthru
          _
      $region36: #{tpu_custom_call.1} parent=5 // pred_fallthru
        _
      %p1257 = scmp.le.s32.totalorder 2, %s16
      // Predicated region
      $region45: #{tpu_custom_call.1} parent=5 // pred_check
        %p1258 = pneg %p1257
      $region46: #{tpu_custom_call.1} parent=5 // pred_check_branch
        %1260 = sbr.rel (%p1258) target = $region48
      $region47: #{tpu_custom_call.1} parent=5 // pred_region
        %s1261 = ssub.s32 %s16, 2
        // Predicated region
        $region49: #{tpu_custom_call.1} parent=47 // pred_check
          %p1262 = pneg %p134
        $region50: #{tpu_custom_call.1} parent=47 // pred_check_branch
          %1264 = sbr.rel (%p1262) target = $region52
        $region51: #{tpu_custom_call.1} parent=47 // pred_region
          %s1265 = sand.u32 %s119, 1
          %s1266 = scalar_lea.sflag [#allocation4], %s1265
          %s1267 = sand.u32 %s119, 1
          %s1268 = smul.addr %s1267, 8
          %s1269 = scalar_lea.vmem [#allocation5], %s1268
          %1271 = dma.done %s1266, 128
        $region52: #{tpu_custom_call.1} parent=47 // pred_fallthru
          _
      $region48: #{tpu_custom_call.1} parent=5 // pred_fallthru
        _
    $region6: #{tpu_custom_call.1} parent=1 // loop_footer
      %s20 = sadd.s32 1, %s16
    $region7: #{tpu_custom_call.1} parent=1 // loop_footer_branch
      %15 = sbr.rel target = $region3
    $region8: #{tpu_custom_call.1} parent=1 // loop_exit
      _
    %1272 = vsyncpa [#allocation3], 1
    %s1273 = scalar_lea.sflag [#allocation3], 1
    %1274 = vsyncpa %s1273, 1
    %1275 = vsyncpa [#allocation4], 1
    %s1276 = scalar_lea.sflag [#allocation4], 1
    %1277 = vsyncpa %s1276, 1

</llo_original>
